<compile_context>
chip_gen: v5e
topology: v5e:2x2
jax: 0.10.0
libtpu: 0.0.40
codegen_flags: <defaults>
</compile_context>

<pallas_src>
import functools

import jax
import jax.numpy as jnp
from jax.experimental import pallas as pl
from jax.experimental.pallas import tpu as pltpu

LANES = 128
SUBLANES = 8
TARGET_TILE_ROWS = 2048   # 2048 x 128 x 4 B = 1 MiB per f32 input block


def _basic_loss_kernel(ir_ref, db_ref, ib_ref, dr_ref, out_ref, *,
                       steps_per_core, tile_rows, valid_rows, needs_mask):
    """Accumulate per-lane partial sums of (ir-db)^2 + (ib-dr)^2."""
    j = pl.program_id(1)          # reduction (row-tile) axis

    @pl.when(j == 0)
    def _():
        out_ref[...] = jnp.zeros_like(out_ref)

    # Upcast in-kernel (no-op for f32 inputs, halves HBM traffic for bf16).
    d_red = ir_ref[...].astype(jnp.float32) - db_ref[...].astype(jnp.float32)
    d_blue = ib_ref[...].astype(jnp.float32) - dr_ref[...].astype(jnp.float32)
    sq = d_red * d_red + d_blue * d_blue            # (tile_rows, LANES) f32

    if needs_mask:
        # Mask rows past the true slab extent (partial last block and any
        # duplicated block slot introduced by the 2-core split).
        i = pl.program_id(0)      # core-parallel axis
        row0 = (i * steps_per_core + j) * tile_rows
        row_ids = row0 + jax.lax.broadcasted_iota(jnp.int32, sq.shape, 0)
        sq = jnp.where(row_ids < valid_rows, sq, 0.0)

    # Fold along the row/sublane axis only; loop-carried dep is a (1,128)
    # vector add.  Cross-lane reduce is deferred to the wrapper.
    out_ref[0:1, :] += jnp.sum(sq, axis=0, keepdims=True)


def _as_slab(x, rows):
    """View x as a lane-dense (rows, LANES) slab without copying when possible."""
    flat = jnp.reshape(x, (-1,))
    n = flat.shape[0]
    if n == rows * LANES:
        return jnp.reshape(flat, (rows, LANES))     # free reshape, no HBM copy
    # TODO(synk): element count not a multiple of 128 -> padded copy fallback.
    return jnp.pad(flat, (0, rows * LANES - n)).reshape(rows, LANES)


@jax.jit
def basic_loss(im_noisy, im_restore, im_restore_noise,
               input_red, denoise_red, noise_red,
               input_blue, denoise_blue, noise_blue):
    del im_noisy, im_restore, im_restore_noise, noise_red, noise_blue  # unused

    n_elems = input_red.size
    rows = -(-n_elems // LANES)                      # slab rows (ceil)

    ir = _as_slab(input_red, rows)
    db = _as_slab(denoise_blue, rows)
    ib = _as_slab(input_blue, rows)
    dr = _as_slab(denoise_red, rows)

    tile_rows = rows if rows <= TARGET_TILE_ROWS else TARGET_TILE_ROWS
    num_blocks = -(-rows // tile_rows)
    num_cores = 2 if num_blocks >= 2 else 1          # v7x: 2 TCs; serial elsewhere
    steps_per_core = -(-num_blocks // num_cores)
    needs_mask = (rows % tile_rows != 0) or (num_cores * steps_per_core != num_blocks)

    def in_map(i, j):
        # Clamp so duplicate slots (odd num_blocks) never DMA out of bounds;
        # their contribution is masked to zero inside the kernel.
        return (jnp.minimum(i * steps_per_core + j, num_blocks - 1), 0)

    in_spec = pl.BlockSpec((tile_rows, LANES), in_map)
    out_spec = pl.BlockSpec((SUBLANES, LANES), lambda i, j: (i, 0))

    kernel = functools.partial(
        _basic_loss_kernel,
        steps_per_core=steps_per_core,
        tile_rows=tile_rows,
        valid_rows=rows,
        needs_mask=needs_mask)

    partials = pl.pallas_call(
        kernel,
        out_shape=jax.ShapeDtypeStruct((num_cores * SUBLANES, LANES), jnp.float32),
        grid_spec=pltpu.PrefetchScalarGridSpec(
            num_scalar_prefetch=0,
            grid=(num_cores, steps_per_core),
            in_specs=[in_spec, in_spec, in_spec, in_spec],
            out_specs=out_spec,
        ),
        compiler_params=pltpu.CompilerParams(
            dimension_semantics=("parallel", "arbitrary"),
            vmem_limit_bytes=32 * 1024 * 1024),
    )(ir, db, ib, dr)

    # Single cross-lane reduce + mean (true element count, not padded count).
    return jnp.sum(partials) / jnp.float32(n_elems)


if __name__ == "__main__":
    key = jax.random.PRNGKey(0)
    shape = (2, 4, 16, 16)  # NCHW
    keys = jax.random.split(key, 9)
    (im_noisy, im_restore, im_restore_noise,
     input_red, denoise_red, noise_red,
     input_blue, denoise_blue, noise_blue) = [
        jax.random.normal(k, shape, dtype=jnp.float32) for k in keys
    ]

    loss = basic_loss(im_noisy, im_restore, im_restore_noise,
                      input_red, denoise_red, noise_red,
                      input_blue, denoise_blue, noise_blue)
    jax.block_until_ready(loss)

    # pure-JAX reference check
    ref = jnp.mean((input_red - denoise_blue) ** 2
                   + (input_blue - denoise_red) ** 2)
    assert jnp.allclose(loss, ref, rtol=1e-5, atol=1e-6), (loss, ref)

    print("KERNEL_OK")
</pallas_src>

<mosaic_0001>
module attributes {stable_mosaic.version = 11 : i64} {
  func.func @_basic_loss_kernel(%arg0: i32, %arg1: i32, %arg2: memref<16x128xf32, #tpu.memory_space<vmem>>, %arg3: memref<16x128xf32, #tpu.memory_space<vmem>>, %arg4: memref<16x128xf32, #tpu.memory_space<vmem>>, %arg5: memref<16x128xf32, #tpu.memory_space<vmem>>, %arg6: memref<8x128xf32, #tpu.memory_space<vmem>>) attributes {dimension_semantics = [#tpu.dimension_semantics<parallel>, #tpu.dimension_semantics<arbitrary>], iteration_bounds = array<i64: 1, 1>, scalar_prefetch = 0 : i64, scratch_operands = 0 : i64, tpu.core_type = #tpu.core_type<tc>, window_params = [{transform_indices = @transform_0, window_bounds = array<i64: 16, 128>}, {transform_indices = @transform_1, window_bounds = array<i64: 16, 128>}, {transform_indices = @transform_2, window_bounds = array<i64: 16, 128>}, {transform_indices = @transform_3, window_bounds = array<i64: 16, 128>}, {transform_indices = @transform_4, window_bounds = array<i64: 8, 128>}]} {
    %c0_i32 = arith.constant 0 : i32
    %0 = arith.cmpi eq, %arg1, %c0_i32 : i32
    %1 = arith.extui %0 : i1 to i32
    %c0_i32_0 = arith.constant 0 : i32
    %2 = arith.cmpi ne, %1, %c0_i32_0 : i32
    scf.if %2 {
      %cst_12 = arith.constant 0.000000e+00 : f32
      %17 = vector.broadcast %cst_12 : f32 to vector<8x128xf32>
      %c0_13 = arith.constant 0 : index
      %c0_14 = arith.constant 0 : index
      %18 = vector.load %arg6[%c0_13, %c0_14] : memref<8x128xf32, #tpu.memory_space<vmem>>, vector<8x128xf32>
      tpu.vector_store %arg6[%c0_13, %c0_14], %17 {strides = array<i32>} : memref<8x128xf32, #tpu.memory_space<vmem>>, vector<8x128xf32>,
    } else {
    }
    %c0 = arith.constant 0 : index
    %c0_1 = arith.constant 0 : index
    %3 = vector.load %arg2[%c0, %c0_1] : memref<16x128xf32, #tpu.memory_space<vmem>>, vector<16x128xf32>
    %c0_2 = arith.constant 0 : index
    %c0_3 = arith.constant 0 : index
    %4 = vector.load %arg3[%c0_2, %c0_3] : memref<16x128xf32, #tpu.memory_space<vmem>>, vector<16x128xf32>
    %5 = arith.subf %3, %4 : vector<16x128xf32>
    %c0_4 = arith.constant 0 : index
    %c0_5 = arith.constant 0 : index
    %6 = vector.load %arg4[%c0_4, %c0_5] : memref<16x128xf32, #tpu.memory_space<vmem>>, vector<16x128xf32>
    %c0_6 = arith.constant 0 : index
    %c0_7 = arith.constant 0 : index
    %7 = vector.load %arg5[%c0_6, %c0_7] : memref<16x128xf32, #tpu.memory_space<vmem>>, vector<16x128xf32>
    %8 = arith.subf %6, %7 : vector<16x128xf32>
    %9 = arith.mulf %5, %5 : vector<16x128xf32>
    %10 = arith.mulf %8, %8 : vector<16x128xf32>
    %11 = arith.addf %9, %10 : vector<16x128xf32>
    %c0_8 = arith.constant 0 : index
    %c0_9 = arith.constant 0 : index
    %12 = vector.load %arg6[%c0_8, %c0_9] : memref<8x128xf32, #tpu.memory_space<vmem>>, vector<1x128xf32>
    %cst = arith.constant dense<0.000000e+00> : vector<128xf32>
    %13 = vector.multi_reduction <add>, %11, %cst [0] : vector<16x128xf32> to vector<128xf32>
    %14 = vector.shape_cast %13 : vector<128xf32> to vector<1x128xf32>
    %15 = arith.addf %12, %14 : vector<1x128xf32>
    %c0_10 = arith.constant 0 : index
    %c0_11 = arith.constant 0 : index
    %16 = vector.load %arg6[%c0_10, %c0_11] : memref<8x128xf32, #tpu.memory_space<vmem>>, vector<1x128xf32>
    tpu.vector_store %arg6[%c0_10, %c0_11], %15 {strides = array<i32>} : memref<8x128xf32, #tpu.memory_space<vmem>>, vector<1x128xf32>,
    return
  }
  func.func @transform_0(%arg0: i32, %arg1: i32) -> (i32, i32) {
    %c1_i32 = arith.constant 1 : i32
    %0 = arith.muli %arg0, %c1_i32 : i32
    %1 = arith.addi %0, %arg1 : i32
    %c0_i32 = arith.constant 0 : i32
    %2 = arith.minsi %1, %c0_i32 : i32
    %c0_i32_0 = arith.constant 0 : i32
    %c0_i32_1 = arith.constant 0 : i32
    return %2, %c0_i32_0 : i32, i32
  }
  func.func @transform_1(%arg0: i32, %arg1: i32) -> (i32, i32) {
    %c1_i32 = arith.constant 1 : i32
    %0 = arith.muli %arg0, %c1_i32 : i32
    %1 = arith.addi %0, %arg1 : i32
    %c0_i32 = arith.constant 0 : i32
    %2 = arith.minsi %1, %c0_i32 : i32
    %c0_i32_0 = arith.constant 0 : i32
    %c0_i32_1 = arith.constant 0 : i32
    return %2, %c0_i32_0 : i32, i32
  }
  func.func @transform_2(%arg0: i32, %arg1: i32) -> (i32, i32) {
    %c1_i32 = arith.constant 1 : i32
    %0 = arith.muli %arg0, %c1_i32 : i32
    %1 = arith.addi %0, %arg1 : i32
    %c0_i32 = arith.constant 0 : i32
    %2 = arith.minsi %1, %c0_i32 : i32
    %c0_i32_0 = arith.constant 0 : i32
    %c0_i32_1 = arith.constant 0 : i32
    return %2, %c0_i32_0 : i32, i32
  }
  func.func @transform_3(%arg0: i32, %arg1: i32) -> (i32, i32) {
    %c1_i32 = arith.constant 1 : i32
    %0 = arith.muli %arg0, %c1_i32 : i32
    %1 = arith.addi %0, %arg1 : i32
    %c0_i32 = arith.constant 0 : i32
    %2 = arith.minsi %1, %c0_i32 : i32
    %c0_i32_0 = arith.constant 0 : i32
    %c0_i32_1 = arith.constant 0 : i32
    return %2, %c0_i32_0 : i32, i32
  }
  func.func @transform_4(%arg0: i32, %arg1: i32) -> (i32, i32) {
    %c0_i32 = arith.constant 0 : i32
    %c0_i32_0 = arith.constant 0 : i32
    return %arg0, %c0_i32 : i32, i32
  }
}

</mosaic_0001>

<llo_original>
// kernel: basic_loss.1
$region0: #{basic_loss.1}
  #allocation0 [shape = 'u32[]', space=smem, size = 0x4, offset = 0x4, fixed_abs, tag = 'smem constant byte address 0x4 - core index']
  #allocation1 [shape = 'u32[72,128]{1,0:T(1,128)}', space=vmem, size = 0x9000, scoped, tag = 'internal scratch']
  %s0 = inlined_call_operand.vmem [shape: f32[16,128], index: 0, kind: input, shape index: {}]
  %s1 = inlined_call_operand.vmem [shape: f32[16,128], index: 1, kind: input, shape index: {}]
  %s2 = inlined_call_operand.vmem [shape: f32[16,128], index: 2, kind: input, shape index: {}]
  %s3 = inlined_call_operand.vmem [shape: f32[16,128], index: 3, kind: input, shape index: {}]
  %s4 = inlined_call_operand.vmem [shape: f32[8,128], index: 4, kind: output, shape index: {}]
  %s5 = sld [smem:[#allocation0]]
  $region30: #{basic_loss.1} parent=0
    _
  %s7 = ssub.s32 1, %s5
  %s8 = scalar_select 0, %s7, %s5
  // Predicated region
  $region2: #{basic_loss.1} parent=0 // pred_check
    _
  $region3: #{basic_loss.1} parent=0 // pred_check_branch
    %10 = sbr.rel (0) target = $region5
  $region4: #{basic_loss.1} parent=0 // pred_region
    %s11 = sadd.s32 0, 0
    %p12 = scmp.lt.s32.totalorder %s11, 0
    %s13 = scalar_select %p12, %s11, 0
    %s14 = smul.u32 2, %s13
    %p15 = scmp.lt.s32.totalorder %s14, 1
    %s16 = scalar_select %p15, %s14, 1
    %s17 = smul.addr %s16, 8
    %s18 = scalar_lea.vmem %s0, %s17
    %s19 = sadd.s32 0, 0
    %p20 = scmp.lt.s32.totalorder %s19, 0
    %s21 = scalar_select %p20, %s19, 0
    %s22 = smul.u32 2, %s21
  $region5: #{basic_loss.1} parent=0 // pred_fallthru
    _
  // Predicated region
  $region6: #{basic_loss.1} parent=0 // pred_check
    _
  $region7: #{basic_loss.1} parent=0 // pred_check_branch
    %24 = sbr.rel (0) target = $region9
  $region8: #{basic_loss.1} parent=0 // pred_region
    %s25 = sadd.s32 0, 0
    %p26 = scmp.lt.s32.totalorder %s25, 0
    %s27 = scalar_select %p26, %s25, 0
    %s28 = smul.u32 2, %s27
    %p29 = scmp.lt.s32.totalorder %s28, 1
    %s30 = scalar_select %p29, %s28, 1
    %s31 = smul.addr %s30, 8
    %s32 = scalar_lea.vmem %s1, %s31
    %s33 = sadd.s32 0, 0
    %p34 = scmp.lt.s32.totalorder %s33, 0
    %s35 = scalar_select %p34, %s33, 0
    %s36 = smul.u32 2, %s35
  $region9: #{basic_loss.1} parent=0 // pred_fallthru
    _
  // Predicated region
  $region10: #{basic_loss.1} parent=0 // pred_check
    _
  $region11: #{basic_loss.1} parent=0 // pred_check_branch
    %38 = sbr.rel (0) target = $region13
  $region12: #{basic_loss.1} parent=0 // pred_region
    %s39 = sadd.s32 0, 0
    %p40 = scmp.lt.s32.totalorder %s39, 0
    %s41 = scalar_select %p40, %s39, 0
    %s42 = smul.u32 2, %s41
    %p43 = scmp.lt.s32.totalorder %s42, 1
    %s44 = scalar_select %p43, %s42, 1
    %s45 = smul.addr %s44, 8
    %s46 = scalar_lea.vmem %s2, %s45
    %s47 = sadd.s32 0, 0
    %p48 = scmp.lt.s32.totalorder %s47, 0
    %s49 = scalar_select %p48, %s47, 0
    %s50 = smul.u32 2, %s49
  $region13: #{basic_loss.1} parent=0 // pred_fallthru
    _
  // Predicated region
  $region14: #{basic_loss.1} parent=0 // pred_check
    _
  $region15: #{basic_loss.1} parent=0 // pred_check_branch
    %52 = sbr.rel (0) target = $region17
  $region16: #{basic_loss.1} parent=0 // pred_region
    %s53 = sadd.s32 0, 0
    %p54 = scmp.lt.s32.totalorder %s53, 0
    %s55 = scalar_select %p54, %s53, 0
    %s56 = smul.u32 2, %s55
    %p57 = scmp.lt.s32.totalorder %s56, 1
    %s58 = scalar_select %p57, %s56, 1
    %s59 = smul.addr %s58, 8
    %s60 = scalar_lea.vmem %s3, %s59
    %s61 = sadd.s32 0, 0
    %p62 = scmp.lt.s32.totalorder %s61, 0
    %s63 = scalar_select %p62, %s61, 0
    %s64 = smul.u32 2, %s63
  $region17: #{basic_loss.1} parent=0 // pred_fallthru
    _
  %s65 = sadd.s32 0, 0
  %p66 = scmp.lt.s32.totalorder %s65, 0
  %s67 = scalar_select %p66, %s65, 0
  %s68 = smul.u32 2, %s67
  %p69 = scmp.lt.s32.totalorder %s68, 1
  %s70 = scalar_select %p69, %s68, 1
  %s71 = smul.addr %s70, 8
  %s72 = scalar_lea.vmem %s0, %s71
  %s73 = sadd.s32 0, 0
  %p74 = scmp.lt.s32.totalorder %s73, 0
  %s75 = scalar_select %p74, %s73, 0
  %s76 = smul.u32 2, %s75
  %p77 = scmp.lt.s32.totalorder %s76, 1
  %s78 = scalar_select %p77, %s76, 1
  %s79 = smul.addr %s78, 8
  %s80 = scalar_lea.vmem %s1, %s79
  %s81 = sadd.s32 0, 0
  %p82 = scmp.lt.s32.totalorder %s81, 0
  %s83 = scalar_select %p82, %s81, 0
  %s84 = smul.u32 2, %s83
  %p85 = scmp.lt.s32.totalorder %s84, 1
  %s86 = scalar_select %p85, %s84, 1
  %s87 = smul.addr %s86, 8
  %s88 = scalar_lea.vmem %s2, %s87
  %s89 = sadd.s32 0, 0
  %p90 = scmp.lt.s32.totalorder %s89, 0
  %s91 = scalar_select %p90, %s89, 0
  %s92 = smul.u32 2, %s91
  %p93 = scmp.lt.s32.totalorder %s92, 1
  %s94 = scalar_select %p93, %s92, 1
  %s95 = smul.addr %s94, 8
  %s96 = scalar_lea.vmem %s3, %s95
  %s97 = sadd.s32 0, 0
  %p98 = scmp.lt.s32.totalorder %s97, 0
  %s99 = scalar_select %p98, %s97, 0
  %s100 = smul.u32 2, %s99
  %p101 = scmp.lt.s32.totalorder %s100, 1
  %s102 = scalar_select %p101, %s100, 1
  %s103 = smul.addr %s102, 8
  %s104 = scalar_lea.vmem %s0, %s103
  %s105 = sadd.s32 0, 0
  %p106 = scmp.lt.s32.totalorder %s105, 0
  %s107 = scalar_select %p106, %s105, 0
  %s108 = smul.u32 2, %s107
  %s109 = sadd.s32 0, 0
  %p110 = scmp.lt.s32.totalorder %s109, 0
  %s111 = scalar_select %p110, %s109, 0
  %s112 = smul.u32 2, %s111
  %p113 = scmp.lt.s32.totalorder %s112, 1
  %s114 = scalar_select %p113, %s112, 1
  %s115 = smul.addr %s114, 8
  %s116 = scalar_lea.vmem %s1, %s115
  %s117 = sadd.s32 0, 0
  %p118 = scmp.lt.s32.totalorder %s117, 0
  %s119 = scalar_select %p118, %s117, 0
  %s120 = smul.u32 2, %s119
  %s121 = sadd.s32 0, 0
  %p122 = scmp.lt.s32.totalorder %s121, 0
  %s123 = scalar_select %p122, %s121, 0
  %s124 = smul.u32 2, %s123
  %p125 = scmp.lt.s32.totalorder %s124, 1
  %s126 = scalar_select %p125, %s124, 1
  %s127 = smul.addr %s126, 8
  %s128 = scalar_lea.vmem %s2, %s127
  %s129 = sadd.s32 0, 0
  %p130 = scmp.lt.s32.totalorder %s129, 0
  %s131 = scalar_select %p130, %s129, 0
  %s132 = smul.u32 2, %s131
  %s133 = sadd.s32 0, 0
  %p134 = scmp.lt.s32.totalorder %s133, 0
  %s135 = scalar_select %p134, %s133, 0
  %s136 = smul.u32 2, %s135
  %p137 = scmp.lt.s32.totalorder %s136, 1
  %s138 = scalar_select %p137, %s136, 1
  %s139 = smul.addr %s138, 8
  %s140 = scalar_lea.vmem %s3, %s139
  %s141 = sadd.s32 0, 0
  %p142 = scmp.lt.s32.totalorder %s141, 0
  %s143 = scalar_select %p142, %s141, 0
  %s144 = smul.u32 2, %s143
  %p145 = scmp.eq.s32.totalorder 0, 0
  // Predicated region
  $region18: #{basic_loss.1} parent=0 // pred_check
    %p146 = pneg %p145
  $region19: #{basic_loss.1} parent=0 // pred_check_branch
    %148 = sbr.rel (%p146) target = $region21
  $region20: #{basic_loss.1} parent=0 // pred_region
    %149 = vst [vmem:[%s4] sm:$0xff] 0.0
  $region21: #{basic_loss.1} parent=0 // pred_fallthru
    _
  %v150 = vld [vmem:[%s104] sm:$0xff]
  %v151 = vld [vmem:[%s104 + $0x8] sm:$0xff]
  %v152 = vld [vmem:[%s116] sm:$0xff]
  %v153 = vld [vmem:[%s116 + $0x8] sm:$0xff]
  %v154 = vsub.f32 %v150, %v152
  %v155 = vsub.f32 %v151, %v153
  %v156 = vld [vmem:[%s128] sm:$0xff]
  %v157 = vld [vmem:[%s128 + $0x8] sm:$0xff]
  %v158 = vld [vmem:[%s140] sm:$0xff]
  %v159 = vld [vmem:[%s140 + $0x8] sm:$0xff]
  %v160 = vsub.f32 %v156, %v158
  %v161 = vsub.f32 %v157, %v159
  %v162 = vmul.f32 %v154, %v154
  %v163 = vmul.f32 %v155, %v155
  %v164 = vmul.f32 %v160, %v160
  %v165 = vmul.f32 %v161, %v161
  %v166 = vadd.f32 %v162, %v164
  %v167 = vadd.f32 %v163, %v165
  %v168 = vld [vmem:[%s4] sm:$0x1]
  %v169 = vadd.f32 %v166, %v167
  %v170 = vrot.slane %v169, 4
  %v171 = vadd.f32 %v169, %v170
  %v172 = vrot.slane %v171, 2
  %v173 = vadd.f32 %v171, %v172
  %v174 = vrot.slane %v173, 1
  %v175 = vadd.f32 %v173, %v174
  %v176 = vadd.f32 %v168, %v175
  %177 = vst [vmem:[%s4] sm:$0x1] %v176
  // Predicated region
  $region22: #{basic_loss.1} parent=0 // pred_check
    _
  $region23: #{basic_loss.1} parent=0 // pred_check_branch
    %179 = sbr.rel (0) target = $region25
  $region24: #{basic_loss.1} parent=0 // pred_region
    _
  $region25: #{basic_loss.1} parent=0 // pred_fallthru
    _
  // Predicated region
  $region26: #{basic_loss.1} parent=0 // pred_check
    _
  $region27: #{basic_loss.1} parent=0 // pred_check_branch
    %181 = sbr.rel (0) target = $region29
  $region28: #{basic_loss.1} parent=0 // pred_region
    _
  $region29: #{basic_loss.1} parent=0 // pred_fallthru
    _

</llo_original>
